<compile_context>
chip_gen: v5e
topology: v5e:2x2
jax: 0.10.0
libtpu: 0.0.40
codegen_flags: <defaults>
</compile_context>

<pallas_src>
import functools
import math

import jax
import jax.numpy as jnp
from jax.experimental import pallas as pl
from jax.experimental.pallas import tpu as pltpu


def _round_up(a, m):
    return (a + m - 1) // m * m


def _vmem_capacity_bytes():
    """Physical per-core VMEM (128 MiB on v5e/v6e, 64 MiB per TC on v7x)."""
    try:
        info = pltpu.get_tpu_info()
        for name in ("vmem_capacity_bytes", "vmem_size_bytes", "vmem_bytes"):
            cap = getattr(info, name, None)
            if cap:
                return int(cap)
    except Exception:
        pass
    return 64 << 20        # conservative fallback (v7x per-TensorCore VMEM)


# --------------------------------------------------------------------------
# In-kernel pieces
# --------------------------------------------------------------------------
def _conv_gate(pooled, w_ref):
    """1 + sigmoid(Conv1d(1,1,k,'same',bias=False)) on a (C, 1) f32 column.

    Cross-correlation over the channel (sublane) axis with zero padding,
    matching PyTorch Conv1d.  Tiny (C, 1) operand evaluated once per batch
    element, so the concat/slice relayouts here are negligible.
    """
    c = pooled.shape[0]
    k = w_ref.shape[0]
    pad = (k - 1) // 2
    if pad > 0:
        zeros = jnp.zeros((pad, 1), dtype=pooled.dtype)
        mp = jnp.concatenate([zeros, pooled, zeros], axis=0)   # (C + 2*pad, 1)
    else:
        mp = pooled
    y = jnp.zeros_like(pooled)
    for j in range(k):                                         # k is small & static
        y = y + w_ref[j] * mp[j:j + c, :]
    return 1.0 + jax.nn.sigmoid(y)


def _esa_fused_kernel(x_ref, w_ref, o_ref, *, inv_hw):
    """Single-pass: one whole (C, HW) slab per batch element (1 read + 1 write)."""
    x = x_ref[...]
    # Accumulate the pooled mean in f32 without an explicit f32 slab copy.
    pooled = jnp.sum(x, axis=1, keepdims=True, dtype=jnp.float32) * inv_hw
    gate = _conv_gate(pooled, w_ref)                           # (C, 1) float32
    # Multiply in f32 (gate stays exact); only the stored product is cast.
    o_ref[...] = (x.astype(jnp.float32) * gate).astype(o_ref.dtype)


def _esa_pool_kernel(x_ref, sum_ref, *, hw):
    """Row-folded pooled sum: grid = (row blocks, HW tiles); HW may be ragged."""
    t = pl.program_id(1)

    @pl.when(t == 0)
    def _init():
        sum_ref[...] = jnp.zeros_like(sum_ref)

    x = x_ref[...]
    lane = jax.lax.broadcasted_iota(jnp.int32, x.shape, 1) + t * x.shape[1]
    xm = jnp.where(lane < hw, x, 0)                 # mask the ragged edge tile
    sum_ref[...] += jnp.sum(xm, axis=1, keepdims=True, dtype=jnp.float32)


def _esa_apply_kernel(x_ref, g_ref, o_ref):
    """out = x * gate on row-folded (B*C, HW) tiles; gate broadcasts over lanes."""
    o_ref[...] = (x_ref[...].astype(jnp.float32) * g_ref[...]).astype(o_ref.dtype)


# --------------------------------------------------------------------------
# Wrapper
# --------------------------------------------------------------------------
def _pick_stream_tiles(rows, hw, itemsize, budget):
    """(row_tile, hw_tile) for streaming (rows, hw) blocks under a byte budget.

    Targets lane-dense tiles >= 512 lanes (HBM-roofline sweet spot); when the
    budget forces narrower tiles, the row tile is shrunk before dropping the
    lane tile below 512.
    """
    bpe = 4 * itemsize + 12       # 2x in + 2x out double-buffered + f32/iota temps
    row_tile = rows if rows <= 1024 else 512
    while True:
        cap_lanes = max(budget // (row_tile * bpe), 1)
        if hw <= cap_lanes:
            return row_tile, hw                      # whole lane axis in one tile
        hw_tile = (cap_lanes // 128) * 128
        if hw_tile >= 512 or row_tile <= 32:
            return row_tile, max(hw_tile, 128)
        row_tile = max(32, (row_tile // 2 // 32) * 32)


def _gate_xla(pooled_bc, conv_w):
    """1 + sigmoid(Conv1d over channels) for a (B, C) f32 pooled-mean array."""
    k = conv_w.shape[0]
    pad = (k - 1) // 2
    c = pooled_bc.shape[1]
    mp = jnp.pad(pooled_bc, ((0, 0), (pad, pad)))
    y = jnp.zeros_like(pooled_bc)
    for j in range(k):
        y = y + conv_w[j] * mp[:, j:j + c]
    return 1.0 + jax.nn.sigmoid(y)


def esa_layer(x_nchw, conv_w, *, single_pass=None, vmem_budget_bytes=None):
    """ESALayer forward.

    x_nchw : (B, C, H, W)
    conv_w : Conv1d(1, 1, k, bias=False) weight; any shape flattening to (k,)
    single_pass : force (True) / forbid (False) the fused single-pass path;
        None picks automatically from the generation-aware VMEM budget.
    vmem_budget_bytes : override of the block byte budget (testing / tuning).
    """
    B, C, H, W = x_nchw.shape
    HW = H * W
    conv_w = jnp.asarray(conv_w).reshape(-1).astype(jnp.float32)
    K = int(conv_w.shape[0])
    if K % 2 != 1:
        raise ValueError("ESA Pallas kernel requires an odd k_size (PyTorch "
                         "'same' padding only matches for odd kernels).")

    x3 = x_nchw.reshape(B, C, HW)            # pure view: no transpose, no copy
    itemsize = jnp.dtype(x3.dtype).itemsize

    # Generation-aware VMEM budget: ~60% of physical per-core VMEM for blocks,
    # scoped limit at ~75% (96 MiB on v5e/v6e, 48 MiB on v7x).
    cap = _vmem_capacity_bytes()
    vmem_limit = max(min(int(cap * 0.75), 100 << 20), 32 << 20)
    budget = int(cap * 0.60) if vmem_budget_bytes is None else int(vmem_budget_bytes)
    cparams = dict(vmem_limit_bytes=vmem_limit)

    # Padded single-pass footprint: double-buffered in + out slabs plus the
    # f32 temporaries of the f32 multiply.
    sublane = {4: 8, 2: 16, 1: 32}.get(itemsize, 8)
    c_pad = _round_up(C, sublane)
    hw_pad = _round_up(HW, 128)
    fused_bytes = 4 * c_pad * hw_pad * itemsize + 2 * c_pad * hw_pad * 4

    if single_pass is None:
        # Need >= ~3 grid steps for prefetch/writeback overlap.
        single_pass = (B >= 3) and (fused_bytes <= budget)

    if single_pass:
        out3 = pl.pallas_call(
            functools.partial(_esa_fused_kernel, inv_hw=1.0 / HW),
            out_shape=jax.ShapeDtypeStruct((B, C, HW), x3.dtype),
            grid=(B,),
            in_specs=[
                pl.BlockSpec((None, C, HW), lambda b: (b, 0, 0)),
                pl.BlockSpec(memory_space=pltpu.MemorySpace.SMEM),
            ],
            out_specs=pl.BlockSpec((None, C, HW), lambda b: (b, 0, 0)),
            compiler_params=pltpu.CompilerParams(
                dimension_semantics=("parallel",), **cparams),
        )(x3, conv_w)
        return out3.reshape(B, C, H, W)

    # ---- Streaming, VMEM-bounded path --------------------------------------
    # Fold (B, C) into one row axis: no per-batch sublane padding for odd /
    # small C, trivially divisible row blocks, fully parallel grids.
    R = B * C
    x2 = x3.reshape(R, HW)
    row_tile, hw_tile = _pick_stream_tiles(R, HW, itemsize, budget)
    grid = (pl.cdiv(R, row_tile), pl.cdiv(HW, hw_tile))

    # Pass 1 (Pallas): pooled sums, reduction axis innermost / 'arbitrary'.
    # TODO(synk): a hierarchical partial-sum split would also spread the
    # reduction across both cores when R < row_tile; not worth it yet.
    pooled_sum = pl.pallas_call(
        functools.partial(_esa_pool_kernel, hw=HW),
        out_shape=jax.ShapeDtypeStruct((R, 1), jnp.float32),
        grid=grid,
        in_specs=[pl.BlockSpec((row_tile, hw_tile), lambda r, t: (r, t))],
        out_specs=pl.BlockSpec((row_tile, 1), lambda r, t: (r, 0)),
        compiler_params=pltpu.CompilerParams(
            dimension_semantics=("parallel", "arbitrary"), **cparams),
    )(x2)

    # Tiny (B, C) conv + sigmoid between the two streaming kernels in XLA.
    gate = _gate_xla(pooled_sum.reshape(B, C) * (1.0 / HW), conv_w)
    gate = gate.reshape(R, 1).astype(jnp.float32)

    # Pass 2 (Pallas): gate apply; both axes independent -> both cores busy
    # even at B == 1, lane-dense stores, ragged edge tiles clipped by Pallas.
    out2 = pl.pallas_call(
        _esa_apply_kernel,
        out_shape=jax.ShapeDtypeStruct((R, HW), x2.dtype),
        grid=grid,
        in_specs=[
            pl.BlockSpec((row_tile, hw_tile), lambda r, t: (r, t)),
            pl.BlockSpec((row_tile, 1), lambda r, t: (r, 0)),
        ],
        out_specs=pl.BlockSpec((row_tile, hw_tile), lambda r, t: (r, t)),
        compiler_params=pltpu.CompilerParams(
            dimension_semantics=("parallel", "parallel"), **cparams),
    )(x2, gate)

    return out2.reshape(B, C, H, W)


def esa_reference(x_nchw, conv_w):
    """Pure-JAX (f32) reference matching the PyTorch module semantics."""
    conv_w = jnp.asarray(conv_w).reshape(-1).astype(jnp.float32)
    xf = x_nchw.astype(jnp.float32)
    pooled = jnp.mean(xf, axis=(2, 3))
    gate = _gate_xla(pooled, conv_w)
    return xf * gate[:, :, None, None]


if __name__ == "__main__":
    key = jax.random.PRNGKey(0)
    kx, kw, kx2, kx3 = jax.random.split(key, 4)

    k_size = 3
    bound = 1.0 / math.sqrt(k_size)     # PyTorch Conv1d default init bound
    conv_w = jax.random.uniform(kw, (k_size,), dtype=jnp.float32,
                                minval=-bound, maxval=bound)

    # 1) Small canonical shape; B < 3 -> streaming (pool + apply) path.
    x = jax.random.normal(kx, (2, 4, 16, 16), dtype=jnp.float32)
    ref = esa_reference(x, conv_w)
    out = jax.block_until_ready(esa_layer(x, conv_w))
    assert out.shape == x.shape and out.dtype == x.dtype
    assert jnp.allclose(out, ref, atol=1e-5, rtol=1e-5), "streaming path mismatch"

    # 2) Same input through the fused single-pass path (forced).
    out_fused = jax.block_until_ready(esa_layer(x, conv_w, single_pass=True))
    assert jnp.allclose(out_fused, ref, atol=1e-5, rtol=1e-5), "fused path mismatch"

    # 3) Odd channel count + non-multiple-of-128 spatial with a tiny budget:
    #    exercises ragged lane tiles (iota mask + clipped edge stores).
    x2 = jax.random.normal(kx2, (1, 6, 17, 17), dtype=jnp.float32)
    ref2 = esa_reference(x2, conv_w)
    out2 = jax.block_until_ready(
        esa_layer(x2, conv_w, single_pass=False, vmem_budget_bytes=16 * 1024))
    assert jnp.allclose(out2, ref2, atol=1e-5, rtol=1e-5), "ragged tiled mismatch"

    # 4) bf16 input with B >= 3 -> fused single-pass path selected automatically.
    x3 = jax.random.normal(kx3, (3, 4, 16, 16), dtype=jnp.bfloat16)
    ref3 = esa_reference(x3, conv_w)
    out3 = jax.block_until_ready(esa_layer(x3, conv_w))
    assert out3.dtype == jnp.bfloat16
    assert jnp.allclose(out3.astype(jnp.float32), ref3, atol=5e-2, rtol=5e-2), \
        "bf16 fused path mismatch"

    print("KERNEL_OK")
</pallas_src>

<mosaic_0001>
module attributes {stable_mosaic.version = 11 : i64} {
  func.func @_esa_pool_kernel(%arg0: i32, %arg1: i32, %arg2: memref<8x256xf32, #tpu.memory_space<vmem>>, %arg3: memref<8x1xf32, #tpu.memory_space<vmem>>) attributes {dimension_semantics = [#tpu.dimension_semantics<parallel>, #tpu.dimension_semantics<arbitrary>], iteration_bounds = array<i64: 1, 1>, scalar_prefetch = 0 : i64, scratch_operands = 0 : i64, tpu.core_type = #tpu.core_type<tc>, window_params = [{transform_indices = @transform_0, window_bounds = array<i64: 8, 256>}, {transform_indices = @transform_1, window_bounds = array<i64: 8, 1>}]} {
    %c0_i32 = arith.constant 0 : i32
    %0 = arith.cmpi eq, %arg1, %c0_i32 : i32
    %1 = arith.extui %0 : i1 to i32
    %c0_i32_0 = arith.constant 0 : i32
    %2 = arith.cmpi ne, %1, %c0_i32_0 : i32
    scf.if %2 {
      %cst_8 = arith.constant 0.000000e+00 : f32
      %18 = vector.broadcast %cst_8 : f32 to vector<8x1xf32>
      %c0_9 = arith.constant 0 : index
      %c0_10 = arith.constant 0 : index
      %19 = vector.load %arg3[%c0_9, %c0_10] : memref<8x1xf32, #tpu.memory_space<vmem>>, vector<8x1xf32>
      tpu.vector_store %arg3[%c0_9, %c0_10], %18 {strides = array<i32>} : memref<8x1xf32, #tpu.memory_space<vmem>>, vector<8x1xf32>,
    } else {
    }
    %c0 = arith.constant 0 : index
    %c0_1 = arith.constant 0 : index
    %3 = vector.load %arg2[%c0, %c0_1] : memref<8x256xf32, #tpu.memory_space<vmem>>, vector<8x256xf32>
    %4 = tpu.iota {dimensions = array<i32: 1>} : vector<8x256xi32>
    %c256_i32 = arith.constant 256 : i32
    %5 = arith.muli %arg1, %c256_i32 : i32
    %6 = vector.broadcast %5 : i32 to vector<8x256xi32>
    %7 = arith.addi %4, %6 : vector<8x256xi32>
    %c256_i32_2 = arith.constant 256 : i32
    %8 = vector.broadcast %c256_i32_2 : i32 to vector<8x256xi32>
    %9 = arith.cmpi slt, %7, %8 : vector<8x256xi32>
    %c0_i32_3 = arith.constant 0 : i32
    %10 = arith.sitofp %c0_i32_3 : i32 to f32
    %11 = vector.broadcast %10 : f32 to vector<8x256xf32>
    %12 = arith.select %9, %3, %11 : vector<8x256xi1>, vector<8x256xf32>
    %c0_4 = arith.constant 0 : index
    %c0_5 = arith.constant 0 : index
    %13 = vector.load %arg3[%c0_4, %c0_5] : memref<8x1xf32, #tpu.memory_space<vmem>>, vector<8x1xf32>
    %cst = arith.constant dense<0.000000e+00> : vector<8xf32>
    %14 = vector.multi_reduction <add>, %12, %cst [1] : vector<8x256xf32> to vector<8xf32>
    %15 = vector.shape_cast %14 : vector<8xf32> to vector<8x1xf32>
    %16 = arith.addf %13, %15 : vector<8x1xf32>
    %c0_6 = arith.constant 0 : index
    %c0_7 = arith.constant 0 : index
    %17 = vector.load %arg3[%c0_6, %c0_7] : memref<8x1xf32, #tpu.memory_space<vmem>>, vector<8x1xf32>
    tpu.vector_store %arg3[%c0_6, %c0_7], %16 {strides = array<i32>} : memref<8x1xf32, #tpu.memory_space<vmem>>, vector<8x1xf32>,
    return
  }
  func.func @transform_0(%arg0: i32, %arg1: i32) -> (i32, i32) {
    %c0_i32 = arith.constant 0 : i32
    return %arg0, %arg1 : i32, i32
  }
  func.func @transform_1(%arg0: i32, %arg1: i32) -> (i32, i32) {
    %c0_i32 = arith.constant 0 : i32
    %c0_i32_0 = arith.constant 0 : i32
    return %arg0, %c0_i32 : i32, i32
  }
}

</mosaic_0001>

<llo_original>
// kernel: tpu_custom_call.1
$region0: #{tpu_custom_call.1}
  #allocation0 [shape = 'u32[]', space=smem, size = 0x4, offset = 0x4, fixed_abs, tag = 'smem constant byte address 0x4 - core index']
  #allocation1 [shape = 'u32[72,128]{1,0:T(1,128)}', space=vmem, size = 0x9000, scoped, tag = 'internal scratch']
  %s0 = inlined_call_operand.hbm [shape: f32[8,256], index: 0, kind: input, shape index: {}]
  %s1 = inlined_call_operand.vmem [shape: f32[8,1], index: 1, kind: output, shape index: {}]
  %s2 = sld [smem:[#allocation0]]
  $region22: #{tpu_custom_call.1} parent=0
    _
  %s4 = ssub.s32 1, %s2
  %s5 = scalar_select 0, %s4, %s2
  $region1: #{tpu_custom_call.1} parent=0
    #allocation2 [shape = 'u8[8192]{0}', space=vmem, size = 0x2000, scoped, tag = 'input window, operand 0, single buffered']
    #allocation3 [shape = 's32[1]{0}', space=sflag, size = 0x4, scoped, tag = 'scoped memory for tpu_custom_call.1']
    %6 = vsyncpa [#allocation3], 0
    // Predicated region
    $region2: #{tpu_custom_call.1} parent=1 // pred_check
      _
    $region3: #{tpu_custom_call.1} parent=1 // pred_check_branch
      %8 = sbr.rel (0) target = $region5
    $region4: #{tpu_custom_call.1} parent=1 // pred_region
      %10 = vsyncadd [#allocation3], 0
      %s12 = sshll.u32 %s0, 4
      %s13 = int_to_ptr.hbm [resolvable:$true] %s12
      %s14 = sshll.u32 [#allocation2], 4
      %s15 = int_to_ptr.vmem [resolvable:$true] %s14
      %17 = dma.hbm_to_vmem [thread:$0]  %s13, 256, %s15, [#allocation3]
    $region5: #{tpu_custom_call.1} parent=1 // pred_fallthru
      _
    // Predicated region
    $region6: #{tpu_custom_call.1} parent=1 // pred_check
      _
    $region7: #{tpu_custom_call.1} parent=1 // pred_check_branch
      %19 = sbr.rel (0) target = $region9
    $region8: #{tpu_custom_call.1} parent=1 // pred_region
      %21 = dma.done [#allocation3], 256
    $region9: #{tpu_custom_call.1} parent=1 // pred_fallthru
      _
    %p22 = scmp.eq.s32.totalorder 0, 0
    // Predicated region
    $region10: #{tpu_custom_call.1} parent=1 // pred_check
      %p23 = pneg %p22
    $region11: #{tpu_custom_call.1} parent=1 // pred_check_branch
      %25 = sbr.rel (%p23) target = $region13
    $region12: #{tpu_custom_call.1} parent=1 // pred_region
      %vm26 = vcmask 7168
      %27 = vst.msk [vmem:[%s1] sm:$0xff] %vm26, 0.0
    $region13: #{tpu_custom_call.1} parent=1 // pred_fallthru
      _
    %v28 = vld [vmem:[#allocation2] sm:$0xff]
    %v29 = vld [vmem:[#allocation2 + $0x8] sm:$0xff]
    %v30 = vlaneseq
    %v31 = vand.u32 %v30, 127
    %v32 = vadd.s32 %v31, 128
    %s33 = smul.u32 0, 256
    %v34 = vstv %s33
    %v35 = vadd.s32 %v31, %v34
    %v36 = vadd.s32 %v32, %v34
    %vm37 = vcmp.lt.s32.totalorder %v35, 256
    %vm38 = vcmp.lt.s32.totalorder %v36, 256
    %v39 = vsel %vm37, %v28, 0.0
    %v40 = vsel %vm38, %v29, 0.0
    %v41 = vld [vmem:[%s1] sm:$0xff]
    %v42 = vadd.f32 %v39, %v40
    %43 = vadd.xlane.f32.xlu0 %v42
    %v44 = vpop.xlane.xlu0 %43
    %v45 = vadd.f32 %v41, %v44
    %vm46 = vcmask 7168
    %47 = vst.msk [vmem:[%s1] sm:$0xff] %vm46, %v45
    // Predicated region
    $region14: #{tpu_custom_call.1} parent=1 // pred_check
      _
    $region15: #{tpu_custom_call.1} parent=1 // pred_check_branch
      %49 = sbr.rel (0) target = $region17
    $region16: #{tpu_custom_call.1} parent=1 // pred_region
      _
    $region17: #{tpu_custom_call.1} parent=1 // pred_fallthru
      _
    // Predicated region
    $region18: #{tpu_custom_call.1} parent=1 // pred_check
      _
    $region19: #{tpu_custom_call.1} parent=1 // pred_check_branch
      %51 = sbr.rel (0) target = $region21
    $region20: #{tpu_custom_call.1} parent=1 // pred_region
      _
    $region21: #{tpu_custom_call.1} parent=1 // pred_fallthru
      _
    %52 = vsyncpa [#allocation3], 1

</llo_original>
